<compile_context>
chip_gen: v7x
topology: tpu7x:2x2x1
jax: 0.10.0
libtpu: 0.0.40
codegen_flags: <defaults>
</compile_context>

<pallas_src>
import jax
import jax.numpy as jnp
from jax.experimental import pallas as pl
from jax.experimental.pallas import tpu as pltpu


def _fused_embed_kernel(z_ref, w_ref, b_ref, out_ref):
    # z_ref: (TM, z_dim) bf16, w_ref: (z_dim, C_pad) bf16, b_ref: (1, C_pad) f32
    acc = jnp.dot(z_ref[...], w_ref[...], preferred_element_type=jnp.float32)
    out_ref[...] = (acc + b_ref[...]).astype(out_ref.dtype)


def embedding_forward(z_list, w1, b1, w2, b2, *, z_num, out_size, in_size,
                      f_size, compute_dtype=jnp.bfloat16):
    """Pallas implementation of Embedding.forward(hyper_net)."""
    h, k = z_num
    n, z_dim = z_list.shape
    assert n == h * k
    off = out_size * f_size * f_size
    C = in_size * off                      # flattened per-latent output width

    # ---- one-time algebraic fusion of the two hypernet layers (f32) ----
    #   h_final[p, o] = sum_d z[d] * W_comb[d, p*off + o] + B_comb[p*off + o]
    w2_r = w2.reshape(z_dim, in_size, z_dim)
    W_comb = jnp.einsum("dpq,qo->dpo", w2_r, w1,
                        precision=jax.lax.Precision.HIGHEST).reshape(z_dim, C)
    B_comb = (jnp.dot(b2.reshape(in_size, z_dim), w1,
                      precision=jax.lax.Precision.HIGHEST)
              + b1[None, :]).reshape(1, C)

    # ---- padding: lane-dense columns (x128), sublane-aligned rows (x8) ----
    C_pad = pl.cdiv(C, 128) * 128
    n8 = pl.cdiv(n, 8) * 8
    # Row tile: 256 suits v5e/v6e/v7x MXUs; cap so the double-buffered f32
    # output block stays well inside v7x's 64 MiB VMEM (default scoped 32 MiB).
    tm_budget = max(8, ((8 << 20) // (C_pad * 4 * 2)) // 8 * 8)
    TM = min(256, n8, tm_budget)
    n_pad = pl.cdiv(n8, TM) * TM

    W_p = jnp.zeros((z_dim, C_pad), jnp.float32).at[:, :C].set(W_comb)
    B_p = jnp.zeros((1, C_pad), jnp.float32).at[:, :C].set(B_comb)
    Z_p = jnp.zeros((n_pad, z_dim), jnp.float32).at[:n, :].set(z_list)

    Z_p = Z_p.astype(compute_dtype)
    W_p = W_p.astype(compute_dtype)        # bias stays f32 (post-accumulate add)

    tiles = pl.pallas_call(
        _fused_embed_kernel,
        out_shape=jax.ShapeDtypeStruct((n_pad, C_pad), jnp.float32),
        grid_spec=pltpu.PrefetchScalarGridSpec(
            num_scalar_prefetch=0,
            grid=(n_pad // TM,),
            in_specs=[
                pl.BlockSpec((TM, z_dim), lambda i: (i, 0)),      # latent rows
                pl.BlockSpec((z_dim, C_pad), lambda i: (0, 0)),   # W_comb (resident)
                pl.BlockSpec((1, C_pad), lambda i: (0, 0)),       # B_comb (resident)
            ],
            out_specs=pl.BlockSpec((TM, C_pad), lambda i: (i, 0)),
        ),
        compiler_params=pltpu.CompilerParams(
            dimension_semantics=("parallel",)),   # disjoint output row blocks
    )(Z_p, W_p, B_p)

    # ---- glue: per-latent torch .view + torch.cat assembly (index shuffle) ----
    tiles = tiles[:n, :C]
    kernels = tiles.reshape(h, k, out_size, in_size, f_size, f_size)
    kernels = kernels.transpose(0, 2, 1, 3, 4, 5)
    return kernels.reshape(h * out_size, k * in_size, f_size, f_size)


def embedding_ref(z_list, w1, b1, w2, b2, *, z_num, out_size, in_size, f_size):
    """Pure-JAX mirror of the PyTorch Embedding.forward + HyperNetwork (f32)."""
    h, k = z_num
    ww = []
    for i in range(h):
        row = []
        for j in range(k):
            z = z_list[i * k + j]
            h_in = (z @ w2 + b2).reshape(in_size, -1)
            h_final = h_in @ w1 + b1
            row.append(h_final.reshape(out_size, in_size, f_size, f_size))
        ww.append(jnp.concatenate(row, axis=1))
    return jnp.concatenate(ww, axis=0)


if __name__ == "__main__":
    # small, forward-consistent shapes
    z_num = (2, 2)            # (h, k)
    z_dim = 8
    f_size = 3
    in_size = 4
    out_size = 4
    h, k = z_num
    n = h * k

    key = jax.random.PRNGKey(0)
    kz, kw1, kb1, kw2, kb2 = jax.random.split(key, 5)

    # Embedding params: h*k latent vectors, fmod(randn, 2)
    z_list = jnp.fmod(jax.random.normal(kz, (n, z_dim), jnp.float32), 2.0)
    # HyperNetwork params (deterministic synthetic init, fmod(randn, 2))
    w1 = jnp.fmod(jax.random.normal(kw1, (z_dim, out_size * f_size * f_size),
                                    jnp.float32), 2.0)
    b1 = jnp.fmod(jax.random.normal(kb1, (out_size * f_size * f_size,),
                                    jnp.float32), 2.0)
    w2 = jnp.fmod(jax.random.normal(kw2, (z_dim, in_size * z_dim),
                                    jnp.float32), 2.0)
    b2 = jnp.fmod(jax.random.normal(kb2, (in_size * z_dim,), jnp.float32), 2.0)

    out = embedding_forward(z_list, w1, b1, w2, b2, z_num=z_num,
                            out_size=out_size, in_size=in_size, f_size=f_size)
    out = jax.block_until_ready(out)

    ref = embedding_ref(z_list, w1, b1, w2, b2, z_num=z_num,
                        out_size=out_size, in_size=in_size, f_size=f_size)

    assert out.shape == (h * out_size, k * in_size, f_size, f_size), out.shape
    # bf16 operands with f32 accumulation -> loosened (relative) tolerance
    # vs. the pure-f32 reference; structural bugs would be off by O(scale).
    err = float(jnp.max(jnp.abs(out - ref)))
    scale = float(jnp.max(jnp.abs(ref)))
    assert err <= 2e-2 * scale + 2e-2, ("mismatch vs reference", err, scale)

    print("KERNEL_OK")
</pallas_src>

<mosaic_0001>
module attributes {stable_mosaic.version = 11 : i64} {
  func.func @_fused_embed_kernel(%arg0: i32, %arg1: memref<8x8xbf16, #tpu.memory_space<vmem>>, %arg2: memref<8x256xbf16, #tpu.memory_space<vmem>>, %arg3: memref<1x256xf32, #tpu.memory_space<vmem>>, %arg4: memref<8x256xf32, #tpu.memory_space<vmem>>) attributes {dimension_semantics = [#tpu.dimension_semantics<parallel>], iteration_bounds = array<i64: 1>, scalar_prefetch = 0 : i64, scratch_operands = 0 : i64, tpu.core_type = #tpu.core_type<tc>, window_params = [{transform_indices = @transform_0, window_bounds = array<i64: 8, 8>}, {pipeline_mode = #tpu.pipeline_mode<synchronous>, transform_indices = @transform_1, window_bounds = array<i64: 8, 256>}, {pipeline_mode = #tpu.pipeline_mode<synchronous>, transform_indices = @transform_2, window_bounds = array<i64: 1, 256>}, {transform_indices = @transform_3, window_bounds = array<i64: 8, 256>}]} {
    %c0 = arith.constant 0 : index
    %c0_0 = arith.constant 0 : index
    %0 = vector.load %arg1[%c0, %c0_0] : memref<8x8xbf16, #tpu.memory_space<vmem>>, vector<8x8xbf16>
    %c0_1 = arith.constant 0 : index
    %c0_2 = arith.constant 0 : index
    %1 = vector.load %arg2[%c0_1, %c0_2] : memref<8x256xbf16, #tpu.memory_space<vmem>>, vector<8x256xbf16>
    %cst = arith.constant dense<0.000000e+00> : vector<8x256xf32>
    %2 = tpu.matmul %0, %1, %cst {dimension_numbers = #tpu.dot_dimension_numbers<[1], [0], [0], [1], [0, 0, 1, 1], [], []>} : vector<8x8xbf16>, vector<8x256xbf16>, vector<8x256xf32> -> vector<8x256xf32>
    %c0_3 = arith.constant 0 : index
    %c0_4 = arith.constant 0 : index
    %3 = vector.load %arg3[%c0_3, %c0_4] : memref<1x256xf32, #tpu.memory_space<vmem>>, vector<1x256xf32>
    %4 = vector.broadcast %3 : vector<1x256xf32> to vector<8x256xf32>
    %5 = arith.addf %2, %4 : vector<8x256xf32>
    %c0_5 = arith.constant 0 : index
    %c0_6 = arith.constant 0 : index
    %6 = vector.load %arg4[%c0_5, %c0_6] : memref<8x256xf32, #tpu.memory_space<vmem>>, vector<8x256xf32>
    tpu.vector_store %arg4[%c0_5, %c0_6], %5 {strides = array<i32>} : memref<8x256xf32, #tpu.memory_space<vmem>>, vector<8x256xf32>,
    return
  }
  func.func @transform_0(%arg0: i32) -> (i32, i32) {
    %c0_i32 = arith.constant 0 : i32
    %c0_i32_0 = arith.constant 0 : i32
    return %arg0, %c0_i32 : i32, i32
  }
  func.func @transform_1(%arg0: i32) -> (i32, i32) {
    %c0_i32 = arith.constant 0 : i32
    %c0_i32_0 = arith.constant 0 : i32
    %c0_i32_1 = arith.constant 0 : i32
    return %c0_i32, %c0_i32_0 : i32, i32
  }
  func.func @transform_2(%arg0: i32) -> (i32, i32) {
    %c0_i32 = arith.constant 0 : i32
    %c0_i32_0 = arith.constant 0 : i32
    %c0_i32_1 = arith.constant 0 : i32
    return %c0_i32, %c0_i32_0 : i32, i32
  }
  func.func @transform_3(%arg0: i32) -> (i32, i32) {
    %c0_i32 = arith.constant 0 : i32
    %c0_i32_0 = arith.constant 0 : i32
    return %arg0, %c0_i32 : i32, i32
  }
}

</mosaic_0001>

<llo_original>
// kernel: tpu_custom_call.1
$region0: #{tpu_custom_call.1}
  #allocation0 [shape = 'u32[]', space=smem, size = 0x4, offset = 0x4, fixed_abs, tag = 'smem constant byte address 0x4 - core index']
  #allocation1 [shape = 'u32[144,128]{1,0:T(1,128)}', space=vmem, size = 0x12000, scoped, tag = 'internal scratch']
  %s0 = inlined_call_operand.hbm [shape: bf16[8,8], index: 0, kind: input, shape index: {}]
  %s1 = inlined_call_operand.hbm [shape: bf16[8,256], index: 1, kind: input, shape index: {}]
  %s2 = inlined_call_operand.vmem [shape: f32[1,256], index: 2, kind: input, shape index: {}]
  %s3 = inlined_call_operand.hbm [shape: f32[8,256], index: 3, kind: output, shape index: {}]
  %s4 = sld [smem:[#allocation0]]
  $region30: #{tpu_custom_call.1} parent=0
    _
  %s6 = ssub.s32 1, %s4
  %s7 = scalar_select 0, %s6, %s4
  $region1: #{tpu_custom_call.1} parent=0
    #allocation2 [shape = 'u8[2048]{0}', space=vmem, size = 0x800, scoped, tag = 'input window, operand 0, single buffered']
    #allocation3 [shape = 's32[1]{0}', space=sflag, size = 0x4, scoped, tag = 'scoped memory for tpu_custom_call.1']
    #allocation4 [shape = 's32[1]{0}', space=sflag, size = 0x4, scoped, tag = 'scoped memory for tpu_custom_call.1']
    #allocation5 [shape = 'u8[4096]{0}', space=vmem, size = 0x1000, scoped, tag = 'input window, operand 1, single buffered']
    #allocation6 [shape = 's32[1]{0}', space=sflag, size = 0x4, scoped, tag = 'scoped memory for tpu_custom_call.1']
    #allocation7 [shape = 'u8[8192]{0}', space=vmem, size = 0x2000, scoped, tag = 'output window, operand 0, single buffered']
    %8 = vsyncpa [#allocation3], 0
    %9 = vsyncpa [#allocation6], 0
    %10 = vsyncpa [#allocation4], 0
    // Predicated region
    $region2: #{tpu_custom_call.1} parent=1 // pred_check
      _
    $region3: #{tpu_custom_call.1} parent=1 // pred_check_branch
      %12 = sbr.rel (0) target = $region5
    $region4: #{tpu_custom_call.1} parent=1 // pred_region
      %s14 = ssub.s32 64, 64
      %15 = vsyncadd [#allocation3], %s14
      %s17 = sshll.u32 [#allocation2], 4
      %s18 = int_to_ptr.vmem [resolvable:$true] %s17
      %20 = dma.hbm_to_vmem [thread:$0]  %s0, 64, %s18, [#allocation3]
    $region5: #{tpu_custom_call.1} parent=1 // pred_fallthru
      _
    // Predicated region
    $region6: #{tpu_custom_call.1} parent=1 // pred_check
      _
    $region7: #{tpu_custom_call.1} parent=1 // pred_check_branch
      %22 = sbr.rel (0) target = $region9
    $region8: #{tpu_custom_call.1} parent=1 // pred_region
      %s24 = ssub.s32 128, 128
      %25 = vsyncadd [#allocation6], %s24
      %s27 = sshll.u32 [#allocation5], 4
      %s28 = int_to_ptr.vmem [resolvable:$true] %s27
      %30 = dma.hbm_to_vmem [thread:$0]  %s1, 128, %s28, [#allocation6]
    $region9: #{tpu_custom_call.1} parent=1 // pred_fallthru
      _
    // Predicated region
    $region10: #{tpu_custom_call.1} parent=1 // pred_check
      _
    $region11: #{tpu_custom_call.1} parent=1 // pred_check_branch
      %32 = sbr.rel (0) target = $region13
    $region12: #{tpu_custom_call.1} parent=1 // pred_region
      _
    $region13: #{tpu_custom_call.1} parent=1 // pred_fallthru
      _
    // Predicated region
    $region14: #{tpu_custom_call.1} parent=1 // pred_check
      _
    $region15: #{tpu_custom_call.1} parent=1 // pred_check_branch
      %34 = sbr.rel (0) target = $region17
    $region16: #{tpu_custom_call.1} parent=1 // pred_region
      %35 = dma.done [#allocation3], 64
    $region17: #{tpu_custom_call.1} parent=1 // pred_fallthru
      _
    // Predicated region
    $region18: #{tpu_custom_call.1} parent=1 // pred_check
      _
    $region19: #{tpu_custom_call.1} parent=1 // pred_check_branch
      %37 = sbr.rel (0) target = $region21
    $region20: #{tpu_custom_call.1} parent=1 // pred_region
      %38 = dma.done [#allocation6], 128
    $region21: #{tpu_custom_call.1} parent=1 // pred_fallthru
      _
    %v40 = vld [vmem:[#allocation2] sm:$0xf]
    %v41 = vld [vmem:[#allocation5] sm:$0xff]
    %v42 = vld [vmem:[%s2] sm:$0x3]
    %v44 = vlaneseq
    %v45 = vshrl.u32 %v44, 7
    %v46 = vsub.s32 0, %v45
    %v47 = vrot.slane %v42, %v46
    %v48 = vlaneseq
    %v49 = vshrl.u32 %v48, 7
    %v50 = vsub.s32 1, %v49
    %v51 = vrot.slane %v42, %v50
    %v55 = vunpack.c.l.b16 %v41
    %v56 = vunpack.c.h.b16 %v41
    %v57 = vpack.c.b16 %v55, %v55
    %v58 = vpack.c.b16 %v56, %v56
    %vm59 = vcmask 64512
    %v61 = vsel %vm59, %v40, 0
    %vm63 = vcmask 1043456
    %v65 = vsel %vm63, %v57, 0
    %v68 = vsel %vm63, %v58, 0
    %70 = vmatprep.subr.bf16.mxu0 %v68
    %71 = vmatpush1.bf16.msra.mxu0 %v65
    %72 = vmatprep.subr.bf16.mxu0 0
    %73 = vmatpush1.bf16.msra.mxu0 0
    %74 = vmatprep.subr.bf16.mxu0 0
    %75 = vmatpush1.bf16.msra.mxu0 0
    %76 = vmatprep.subr.bf16.mxu0 0
    %77 = vmatpush1.bf16.msra.mxu0 0
    %78 = vmatprep.subr.bf16.mxu0 0
    %79 = vmatpush1.bf16.msra.mxu0 0
    %80 = vmatprep.subr.bf16.mxu0 0
    %81 = vmatpush1.bf16.msra.mxu0 0
    %82 = vmatprep.subr.bf16.mxu0 0
    %83 = vmatpush1.bf16.msra.mxu0 0
    %84 = vmatprep.subr.bf16.mxu0 0
    %85 = vmatpush1.bf16.msra.mxu0 0
    %86 = vmatprep.subr.bf16.mxu0 0
    %87 = vmatpush1.bf16.msra.mxu0 0
    %88 = vmatprep.subr.bf16.mxu0 0
    %89 = vmatpush1.bf16.msra.mxu0 0
    %90 = vmatprep.subr.bf16.mxu0 0
    %91 = vmatpush1.bf16.msra.mxu0 0
    %92 = vmatprep.subr.bf16.mxu0 0
    %93 = vmatpush1.bf16.msra.mxu0 0
    %94 = vmatprep.subr.bf16.mxu0 0
    %95 = vmatpush1.bf16.msra.mxu0 0
    %96 = vmatprep.subr.bf16.mxu0 0
    %97 = vmatpush1.bf16.msra.mxu0 0
    %98 = vmatprep.subr.bf16.mxu0 0
    %99 = vmatpush1.bf16.msra.mxu0 0
    %100 = vmatprep.subr.bf16.mxu0 0
    %101 = vmatpush1.bf16.msra.mxu0 0
    %102 = vmatprep.mubr.bf16.mxu0 0
    %103 = vmatmul.mubr.bf16.gmra.mrb[0].mxu0 %v61
    %v104 = vpop.f32.mrb[0].mxu0
    %v105 = vadd.f32 %v47, %v104
    %v106 = vpop.f32.mrb[0].mxu0
    %v107 = vadd.f32 %v51, %v106
    %v108 = vpop.f32.mrb[0].mxu0
    %v109 = vpop.f32.mrb[0].mxu0
    %110 = vdwg.mxu0
    %111 = vst [vmem:[#allocation7] sm:$0xff] %v105
    %112 = vst [vmem:[#allocation7 + $0x8] sm:$0xff] %v107
    // Predicated region
    $region22: #{tpu_custom_call.1} parent=1 // pred_check
      _
    $region23: #{tpu_custom_call.1} parent=1 // pred_check_branch
      %114 = sbr.rel (0) target = $region25
    $region24: #{tpu_custom_call.1} parent=1 // pred_region
      %s116 = ssub.s32 256, 256
      %117 = vsyncadd [#allocation4], %s116
      %s119 = sshll.u32 [#allocation7], 4
      %s120 = int_to_ptr.vmem [resolvable:$true] %s119
      %122 = dma.vmem_to_hbm [thread:$0]  %s120, 256, %s3, [#allocation4]
    $region25: #{tpu_custom_call.1} parent=1 // pred_fallthru
      _
    // Predicated region
    $region26: #{tpu_custom_call.1} parent=1 // pred_check
      _
    $region27: #{tpu_custom_call.1} parent=1 // pred_check_branch
      %124 = sbr.rel (0) target = $region29
    $region28: #{tpu_custom_call.1} parent=1 // pred_region
      %125 = dma.done [#allocation4], 256
    $region29: #{tpu_custom_call.1} parent=1 // pred_fallthru
      _
    %126 = vsyncpa [#allocation3], 1
    %127 = vsyncpa [#allocation6], 1
    %128 = vsyncpa [#allocation4], 1

</llo_original>
